<compile_context>
chip_gen: v6e
topology: v6e:2x2x1
jax: 0.10.0
libtpu: 0.0.40
codegen_flags: <defaults>
</compile_context>

<pallas_src>
import jax
import jax.numpy as jnp
from jax.experimental import pallas as pl
from jax.experimental.pallas import tpu as pltpu

LANE = 128
EPS = 1e-5


def _round_up(x, m):
    return (x + m - 1) // m * m


def _pad2d(a, rows, cols, dtype=None):
    a = jnp.pad(a, ((0, rows - a.shape[0]), (0, cols - a.shape[1])))
    return a.astype(dtype) if dtype is not None else a


def _choose_k_tile(k_padded, max_tile=512):
    """Largest 128-multiple <= max_tile that divides the (128-aligned) K dim."""
    for cand in (512, 384, 256, 128):
        if cand <= max_tile and k_padded % cand == 0:
            return cand
    return k_padded


def _vmem_limit_bytes():
    """~half of physical VMEM: 64 MiB on v5e/v6e (128 MiB), 32 MiB on v7x (64 MiB)."""
    cap = None
    try:
        cap = getattr(pltpu.get_tpu_info(), "vmem_capacity_bytes", None)
    except Exception:
        cap = None
    if not cap:
        cap = 128 * 1024 * 1024
    return int(min(max(cap // 2, 32 * 1024 * 1024), 96 * 1024 * 1024))


# --------- phase 1: hidden pre-activation (K-tiled) + per-tile BN stats -----
def _hidden_stats_kernel(x_ref, w1_ref, h_ref, hsum_ref, hss_ref, acc_ref):
    k = pl.program_id(1)

    @pl.when(k == 0)
    def _():
        acc_ref[...] = jnp.zeros_like(acc_ref)

    # (tb, tk) bf16 @ (tk, h_p) bf16 -> f32 accumulation on the MXU.
    # b1 is intentionally omitted: BatchNorm's mean subtraction cancels it.
    acc_ref[...] += jnp.dot(x_ref[...], w1_ref[...],
                            preferred_element_type=jnp.float32)

    @pl.when(k == pl.num_programs(1) - 1)
    def _():
        h = acc_ref[...]                       # full-precision pre-activation
        h_ref[...] = h.astype(jnp.bfloat16)    # bf16 round-trip to HBM
        # Single-pass batch statistics from the f32 accumulator (exact stats).
        hsum_ref[...] = jnp.sum(h, axis=0, keepdims=True)
        hss_ref[...] = jnp.sum(h * h, axis=0, keepdims=True)


# --------- phase 2: folded BN affine + ReLU + projection (K-tiled) ----------
def _project_kernel(h_ref, scale_ref, shift_ref, w2_ref, b2_ref, o_ref,
                    acc_ref):
    k = pl.program_id(1)

    @pl.when(k == 0)
    def _():
        acc_ref[...] = jnp.zeros_like(acc_ref)

    # Folded BatchNorm: one FMA (h*scale + shift), ReLU in f32 on the VPU,
    # bf16 cast only for the MXU operand.
    a = jnp.maximum(
        h_ref[...].astype(jnp.float32) * scale_ref[...] + shift_ref[...], 0.0)
    acc_ref[...] += jnp.dot(a.astype(jnp.bfloat16), w2_ref[...],
                            preferred_element_type=jnp.float32)

    @pl.when(k == pl.num_programs(1) - 1)
    def _():
        o_ref[...] = acc_ref[...] + b2_ref[...]


def mlp_forward(x, w1, b1, gamma, beta, w2, b2, *, batch_tile=512):
    """Forward of Linear -> BatchNorm1d (training) -> ReLU -> Linear.

    `b1` is accepted for interface parity with nn.Linear but is mathematically
    cancelled by the BatchNorm mean subtraction, so it never enters the kernel.
    """
    del b1  # cancelled by BatchNorm (training mode)

    B, dim = x.shape
    H = w1.shape[1]
    P = w2.shape[1]

    # Lane-dense padding of every feature axis.
    d_p = _round_up(dim, LANE)
    h_p = _round_up(H, LANE)
    p_p = _round_up(P, LANE)

    # Batch tile: 128-aligned, capped near B/2 so v7x's two TensorCores both
    # get work; tiny batches fall back to a 16-aligned (bf16 sublane) tile.
    tb_target = batch_tile
    if B >= 2 * LANE:
        tb_target = min(tb_target, _round_up((B + 1) // 2, LANE))
    if B >= LANE:
        tb = _round_up(min(tb_target, _round_up(B, LANE)), LANE)
    else:
        tb = _round_up(B, 16)
    b_p = _round_up(B, tb)
    n_tiles = b_p // tb

    # K tiles (stream the weights instead of holding them VMEM-resident).
    tk1 = _choose_k_tile(d_p)   # contraction over `dim` in phase 1
    tk2 = _choose_k_tile(h_p)   # contraction over `hidden` in phase 2
    nk1 = d_p // tk1
    nk2 = h_p // tk2

    x_p = _pad2d(x, b_p, d_p, jnp.bfloat16)
    w1_p = _pad2d(w1, d_p, h_p, jnp.bfloat16)
    w2_p = _pad2d(w2, h_p, p_p, jnp.bfloat16)
    gamma_p = _pad2d(gamma, 1, h_p)
    beta_p = _pad2d(beta, 1, h_p)
    b2_p = _pad2d(b2, 1, p_p)

    cparams = pltpu.CompilerParams(
        dimension_semantics=("parallel", "arbitrary"),
        vmem_limit_bytes=_vmem_limit_bytes(),
    )

    # ---- phase 1: hidden pre-activation (bf16 out) + per-tile stats ----
    h_arr, hsum_part, hss_part = pl.pallas_call(
        _hidden_stats_kernel,
        grid=(n_tiles, nk1),
        in_specs=[
            pl.BlockSpec((tb, tk1), lambda i, k: (i, k)),     # x tile
            pl.BlockSpec((tk1, h_p), lambda i, k: (k, 0)),    # w1 K-chunk
        ],
        out_specs=[
            pl.BlockSpec((tb, h_p), lambda i, k: (i, 0)),     # h tile (bf16)
            pl.BlockSpec((1, h_p), lambda i, k: (i, 0)),      # per-tile sum
            pl.BlockSpec((1, h_p), lambda i, k: (i, 0)),      # per-tile sumsq
        ],
        out_shape=[
            jax.ShapeDtypeStruct((b_p, h_p), jnp.bfloat16),
            jax.ShapeDtypeStruct((n_tiles, h_p), jnp.float32),
            jax.ShapeDtypeStruct((n_tiles, h_p), jnp.float32),
        ],
        scratch_shapes=[pltpu.VMEM((tb, h_p), jnp.float32)],
        compiler_params=cparams,
    )(x_p, w1_p)

    # ---- full-batch stat reduction + BN-affine fold (tiny O(H) jnp work) ----
    # Zero-padded batch rows contribute 0 to both sums, so dividing by the
    # true B keeps training-mode BatchNorm statistics exact.
    mean = hsum_part.sum(axis=0, keepdims=True) / B                     # (1,h_p)
    var = jnp.maximum(hss_part.sum(axis=0, keepdims=True) / B
                      - mean * mean, 0.0)                               # (1,h_p)
    scale = gamma_p * jax.lax.rsqrt(var + EPS)                          # (1,h_p)
    shift = beta_p - mean * scale                                       # (1,h_p)

    # ---- phase 2: normalize + ReLU + projection (K-tiled over hidden) ----
    out_p = pl.pallas_call(
        _project_kernel,
        grid=(n_tiles, nk2),
        in_specs=[
            pl.BlockSpec((tb, tk2), lambda i, k: (i, k)),     # h tile (bf16)
            pl.BlockSpec((1, tk2), lambda i, k: (0, k)),      # scale chunk
            pl.BlockSpec((1, tk2), lambda i, k: (0, k)),      # shift chunk
            pl.BlockSpec((tk2, p_p), lambda i, k: (k, 0)),    # w2 K-chunk
            pl.BlockSpec((1, p_p), lambda i, k: (0, 0)),      # b2
        ],
        out_specs=pl.BlockSpec((tb, p_p), lambda i, k: (i, 0)),
        out_shape=jax.ShapeDtypeStruct((b_p, p_p), jnp.float32),
        scratch_shapes=[pltpu.VMEM((tb, p_p), jnp.float32)],
        compiler_params=cparams,
    )(h_arr, scale, shift, w2_p, b2_p)

    return out_p[:B, :P]


def init_params(key, dim, hidden_size, projection_size):
    k1, k2, k3, k4 = jax.random.split(key, 4)
    # PyTorch nn.Linear default init: U(-1/sqrt(fan_in), 1/sqrt(fan_in))
    lim1 = 1.0 / (dim ** 0.5)
    lim2 = 1.0 / (hidden_size ** 0.5)
    w1 = jax.random.uniform(k1, (dim, hidden_size), jnp.float32, -lim1, lim1)
    b1 = jax.random.uniform(k2, (1, hidden_size), jnp.float32, -lim1, lim1)
    w2 = jax.random.uniform(k3, (hidden_size, projection_size), jnp.float32,
                            -lim2, lim2)
    b2 = jax.random.uniform(k4, (1, projection_size), jnp.float32, -lim2, lim2)
    # BatchNorm1d affine params: gamma=1, beta=0 at init
    gamma = jnp.ones((1, hidden_size), jnp.float32)
    beta = jnp.zeros((1, hidden_size), jnp.float32)
    return w1, b1, gamma, beta, w2, b2


def reference_forward(x, w1, b1, gamma, beta, w2, b2):
    # Exact f32 PyTorch-equivalent forward (b1 included; BN cancels it anyway).
    h = x @ w1 + b1
    mean = jnp.mean(h, axis=0, keepdims=True)
    var = jnp.mean((h - mean) ** 2, axis=0, keepdims=True)
    h = gamma * (h - mean) * jax.lax.rsqrt(var + EPS) + beta
    h = jnp.maximum(h, 0.0)
    return h @ w2 + b2


if __name__ == "__main__":
    # Small configuration consistent with the module (dim -> hidden -> proj).
    B, dim, hidden_size, projection_size = 64, 32, 128, 16

    key = jax.random.PRNGKey(0)
    kx, kp = jax.random.split(key)
    x = jax.random.normal(kx, (B, dim), jnp.float32)
    params = init_params(kp, dim, hidden_size, projection_size)

    forward = jax.jit(mlp_forward, static_argnames=("batch_tile",))
    out = forward(x, *params)
    jax.block_until_ready(out)

    ref = reference_forward(x, *params)
    assert out.shape == (B, projection_size)
    max_err = float(jnp.max(jnp.abs(out - ref)))
    # Tolerance accounts for bf16 MXU operands / bf16 h round-trip vs f32 ref.
    assert jnp.allclose(out, ref, atol=5e-2, rtol=5e-2), f"max abs err {max_err}"

    print("KERNEL_OK")
</pallas_src>

<mosaic_0001>
module attributes {stable_mosaic.version = 11 : i64} {
  func.func @_hidden_stats_kernel(%arg0: i32, %arg1: i32, %arg2: memref<64x128xbf16, #tpu.memory_space<vmem>>, %arg3: memref<128x128xbf16, #tpu.memory_space<vmem>>, %arg4: memref<64x128xbf16, #tpu.memory_space<vmem>>, %arg5: memref<1x128xf32, #tpu.memory_space<vmem>>, %arg6: memref<1x128xf32, #tpu.memory_space<vmem>>, %arg7: memref<64x128xf32, #tpu.memory_space<vmem>>) attributes {dimension_semantics = [#tpu.dimension_semantics<parallel>, #tpu.dimension_semantics<arbitrary>], iteration_bounds = array<i64: 1, 1>, scalar_prefetch = 0 : i64, scratch_operands = 1 : i64, tpu.core_type = #tpu.core_type<tc>, window_params = [{transform_indices = @transform_0, window_bounds = array<i64: 64, 128>}, {transform_indices = @transform_1, window_bounds = array<i64: 128, 128>}, {transform_indices = @transform_2, window_bounds = array<i64: 64, 128>}, {transform_indices = @transform_3, window_bounds = array<i64: 1, 128>}, {transform_indices = @transform_4, window_bounds = array<i64: 1, 128>}]} {
    %c0_i32 = arith.constant 0 : i32
    %0 = arith.cmpi eq, %arg1, %c0_i32 : i32
    %1 = arith.extui %0 : i1 to i32
    %c0_i32_0 = arith.constant 0 : i32
    %2 = arith.cmpi ne, %1, %c0_i32_0 : i32
    scf.if %2 {
      %cst_10 = arith.constant 0.000000e+00 : f32
      %12 = vector.broadcast %cst_10 : f32 to vector<64x128xf32>
      %c0_11 = arith.constant 0 : index
      %c0_12 = arith.constant 0 : index
      %13 = vector.load %arg7[%c0_11, %c0_12] : memref<64x128xf32, #tpu.memory_space<vmem>>, vector<64x128xf32>
      tpu.vector_store %arg7[%c0_11, %c0_12], %12 {strides = array<i32>} : memref<64x128xf32, #tpu.memory_space<vmem>>, vector<64x128xf32>,
    } else {
    }
    %c0 = arith.constant 0 : index
    %c0_1 = arith.constant 0 : index
    %3 = vector.load %arg7[%c0, %c0_1] : memref<64x128xf32, #tpu.memory_space<vmem>>, vector<64x128xf32>
    %c0_2 = arith.constant 0 : index
    %c0_3 = arith.constant 0 : index
    %4 = vector.load %arg2[%c0_2, %c0_3] : memref<64x128xbf16, #tpu.memory_space<vmem>>, vector<64x128xbf16>
    %c0_4 = arith.constant 0 : index
    %c0_5 = arith.constant 0 : index
    %5 = vector.load %arg3[%c0_4, %c0_5] : memref<128x128xbf16, #tpu.memory_space<vmem>>, vector<128x128xbf16>
    %cst = arith.constant dense<0.000000e+00> : vector<64x128xf32>
    %6 = tpu.matmul %4, %5, %cst {dimension_numbers = #tpu.dot_dimension_numbers<[1], [0], [0], [1], [0, 0, 1, 1], [], []>} : vector<64x128xbf16>, vector<128x128xbf16>, vector<64x128xf32> -> vector<64x128xf32>
    %7 = arith.addf %3, %6 : vector<64x128xf32>
    %c0_6 = arith.constant 0 : index
    %c0_7 = arith.constant 0 : index
    %8 = vector.load %arg7[%c0_6, %c0_7] : memref<64x128xf32, #tpu.memory_space<vmem>>, vector<64x128xf32>
    tpu.vector_store %arg7[%c0_6, %c0_7], %7 {strides = array<i32>} : memref<64x128xf32, #tpu.memory_space<vmem>>, vector<64x128xf32>,
    %c0_i32_8 = arith.constant 0 : i32
    %9 = arith.cmpi eq, %arg1, %c0_i32_8 : i32
    %10 = arith.extui %9 : i1 to i32
    %c0_i32_9 = arith.constant 0 : i32
    %11 = arith.cmpi ne, %10, %c0_i32_9 : i32
    scf.if %11 {
      %c0_10 = arith.constant 0 : index
      %c0_11 = arith.constant 0 : index
      %12 = vector.load %arg7[%c0_10, %c0_11] : memref<64x128xf32, #tpu.memory_space<vmem>>, vector<64x128xf32>
      %13 = arith.truncf %12 : vector<64x128xf32> to vector<64x128xbf16>
      %c0_12 = arith.constant 0 : index
      %c0_13 = arith.constant 0 : index
      %14 = vector.load %arg4[%c0_12, %c0_13] : memref<64x128xbf16, #tpu.memory_space<vmem>>, vector<64x128xbf16>
      tpu.vector_store %arg4[%c0_12, %c0_13], %13 {strides = array<i32>} : memref<64x128xbf16, #tpu.memory_space<vmem>>, vector<64x128xbf16>,
      %cst_14 = arith.constant dense<0.000000e+00> : vector<128xf32>
      %15 = vector.multi_reduction <add>, %12, %cst_14 [0] : vector<64x128xf32> to vector<128xf32>
      %16 = vector.shape_cast %15 : vector<128xf32> to vector<1x128xf32>
      %c0_15 = arith.constant 0 : index
      %c0_16 = arith.constant 0 : index
      %17 = vector.load %arg5[%c0_15, %c0_16] : memref<1x128xf32, #tpu.memory_space<vmem>>, vector<1x128xf32>
      tpu.vector_store %arg5[%c0_15, %c0_16], %16 {strides = array<i32>} : memref<1x128xf32, #tpu.memory_space<vmem>>, vector<1x128xf32>,
      %18 = arith.mulf %12, %12 : vector<64x128xf32>
      %cst_17 = arith.constant dense<0.000000e+00> : vector<128xf32>
      %19 = vector.multi_reduction <add>, %18, %cst_17 [0] : vector<64x128xf32> to vector<128xf32>
      %20 = vector.shape_cast %19 : vector<128xf32> to vector<1x128xf32>
      %c0_18 = arith.constant 0 : index
      %c0_19 = arith.constant 0 : index
      %21 = vector.load %arg6[%c0_18, %c0_19] : memref<1x128xf32, #tpu.memory_space<vmem>>, vector<1x128xf32>
      tpu.vector_store %arg6[%c0_18, %c0_19], %20 {strides = array<i32>} : memref<1x128xf32, #tpu.memory_space<vmem>>, vector<1x128xf32>,
    } else {
    }
    return
  }
  func.func @transform_0(%arg0: i32, %arg1: i32) -> (i32, i32) {
    %c0_i32 = arith.constant 0 : i32
    return %arg0, %arg1 : i32, i32
  }
  func.func @transform_1(%arg0: i32, %arg1: i32) -> (i32, i32) {
    %c0_i32 = arith.constant 0 : i32
    %c0_i32_0 = arith.constant 0 : i32
    return %arg1, %c0_i32 : i32, i32
  }
  func.func @transform_2(%arg0: i32, %arg1: i32) -> (i32, i32) {
    %c0_i32 = arith.constant 0 : i32
    %c0_i32_0 = arith.constant 0 : i32
    return %arg0, %c0_i32 : i32, i32
  }
  func.func @transform_3(%arg0: i32, %arg1: i32) -> (i32, i32) {
    %c0_i32 = arith.constant 0 : i32
    %c0_i32_0 = arith.constant 0 : i32
    return %arg0, %c0_i32 : i32, i32
  }
  func.func @transform_4(%arg0: i32, %arg1: i32) -> (i32, i32) {
    %c0_i32 = arith.constant 0 : i32
    %c0_i32_0 = arith.constant 0 : i32
    return %arg0, %c0_i32 : i32, i32
  }
}

module attributes {stable_mosaic.version = 11 : i64} {
  func.func @_project_kernel(%arg0: i32, %arg1: i32, %arg2: memref<64x128xbf16, #tpu.memory_space<vmem>>, %arg3: memref<1x128xf32, #tpu.memory_space<vmem>>, %arg4: memref<1x128xf32, #tpu.memory_space<vmem>>, %arg5: memref<128x128xbf16, #tpu.memory_space<vmem>>, %arg6: memref<1x128xf32, #tpu.memory_space<vmem>>, %arg7: memref<64x128xf32, #tpu.memory_space<vmem>>, %arg8: memref<64x128xf32, #tpu.memory_space<vmem>>) attributes {dimension_semantics = [#tpu.dimension_semantics<parallel>, #tpu.dimension_semantics<arbitrary>], iteration_bounds = array<i64: 1, 1>, scalar_prefetch = 0 : i64, scratch_operands = 1 : i64, tpu.core_type = #tpu.core_type<tc>, window_params = [{transform_indices = @transform_0, window_bounds = array<i64: 64, 128>}, {transform_indices = @transform_1, window_bounds = array<i64: 1, 128>}, {transform_indices = @transform_2, window_bounds = array<i64: 1, 128>}, {transform_indices = @transform_3, window_bounds = array<i64: 128, 128>}, {pipeline_mode = #tpu.pipeline_mode<synchronous>, transform_indices = @transform_4, window_bounds = array<i64: 1, 128>}, {transform_indices = @transform_5, window_bounds = array<i64: 64, 128>}]} {
    %c0_i32 = arith.constant 0 : i32
    %0 = arith.cmpi eq, %arg1, %c0_i32 : i32
    %1 = arith.extui %0 : i1 to i32
    %c0_i32_0 = arith.constant 0 : i32
    %2 = arith.cmpi ne, %1, %c0_i32_0 : i32
    scf.if %2 {
      %cst_15 = arith.constant 0.000000e+00 : f32
      %22 = vector.broadcast %cst_15 : f32 to vector<64x128xf32>
      %c0_16 = arith.constant 0 : index
      %c0_17 = arith.constant 0 : index
      %23 = vector.load %arg8[%c0_16, %c0_17] : memref<64x128xf32, #tpu.memory_space<vmem>>, vector<64x128xf32>
      tpu.vector_store %arg8[%c0_16, %c0_17], %22 {strides = array<i32>} : memref<64x128xf32, #tpu.memory_space<vmem>>, vector<64x128xf32>,
    } else {
    }
    %c0 = arith.constant 0 : index
    %c0_1 = arith.constant 0 : index
    %3 = vector.load %arg2[%c0, %c0_1] : memref<64x128xbf16, #tpu.memory_space<vmem>>, vector<64x128xbf16>
    %4 = arith.extf %3 : vector<64x128xbf16> to vector<64x128xf32>
    %c0_2 = arith.constant 0 : index
    %c0_3 = arith.constant 0 : index
    %5 = vector.load %arg3[%c0_2, %c0_3] : memref<1x128xf32, #tpu.memory_space<vmem>>, vector<1x128xf32>
    %6 = vector.broadcast %5 : vector<1x128xf32> to vector<64x128xf32>
    %7 = arith.mulf %4, %6 : vector<64x128xf32>
    %c0_4 = arith.constant 0 : index
    %c0_5 = arith.constant 0 : index
    %8 = vector.load %arg4[%c0_4, %c0_5] : memref<1x128xf32, #tpu.memory_space<vmem>>, vector<1x128xf32>
    %9 = vector.broadcast %8 : vector<1x128xf32> to vector<64x128xf32>
    %10 = arith.addf %7, %9 : vector<64x128xf32>
    %cst = arith.constant 0.000000e+00 : f32
    %11 = vector.broadcast %cst : f32 to vector<64x128xf32>
    %12 = arith.maximumf %10, %11 : vector<64x128xf32>
    %c0_6 = arith.constant 0 : index
    %c0_7 = arith.constant 0 : index
    %13 = vector.load %arg8[%c0_6, %c0_7] : memref<64x128xf32, #tpu.memory_space<vmem>>, vector<64x128xf32>
    %14 = arith.truncf %12 : vector<64x128xf32> to vector<64x128xbf16>
    %c0_8 = arith.constant 0 : index
    %c0_9 = arith.constant 0 : index
    %15 = vector.load %arg5[%c0_8, %c0_9] : memref<128x128xbf16, #tpu.memory_space<vmem>>, vector<128x128xbf16>
    %cst_10 = arith.constant dense<0.000000e+00> : vector<64x128xf32>
    %16 = tpu.matmul %14, %15, %cst_10 {dimension_numbers = #tpu.dot_dimension_numbers<[1], [0], [0], [1], [0, 0, 1, 1], [], []>} : vector<64x128xbf16>, vector<128x128xbf16>, vector<64x128xf32> -> vector<64x128xf32>
    %17 = arith.addf %13, %16 : vector<64x128xf32>
    %c0_11 = arith.constant 0 : index
    %c0_12 = arith.constant 0 : index
    %18 = vector.load %arg8[%c0_11, %c0_12] : memref<64x128xf32, #tpu.memory_space<vmem>>, vector<64x128xf32>
    tpu.vector_store %arg8[%c0_11, %c0_12], %17 {strides = array<i32>} : memref<64x128xf32, #tpu.memory_space<vmem>>, vector<64x128xf32>,
    %c0_i32_13 = arith.constant 0 : i32
    %19 = arith.cmpi eq, %arg1, %c0_i32_13 : i32
    %20 = arith.extui %19 : i1 to i32
    %c0_i32_14 = arith.constant 0 : i32
    %21 = arith.cmpi ne, %20, %c0_i32_14 : i32
    scf.if %21 {
      %c0_15 = arith.constant 0 : index
      %c0_16 = arith.constant 0 : index
      %22 = vector.load %arg8[%c0_15, %c0_16] : memref<64x128xf32, #tpu.memory_space<vmem>>, vector<64x128xf32>
      %c0_17 = arith.constant 0 : index
      %c0_18 = arith.constant 0 : index
      %23 = vector.load %arg6[%c0_17, %c0_18] : memref<1x128xf32, #tpu.memory_space<vmem>>, vector<1x128xf32>
      %24 = vector.broadcast %23 : vector<1x128xf32> to vector<64x128xf32>
      %25 = arith.addf %22, %24 : vector<64x128xf32>
      %c0_19 = arith.constant 0 : index
      %c0_20 = arith.constant 0 : index
      %26 = vector.load %arg7[%c0_19, %c0_20] : memref<64x128xf32, #tpu.memory_space<vmem>>, vector<64x128xf32>
      tpu.vector_store %arg7[%c0_19, %c0_20], %25 {strides = array<i32>} : memref<64x128xf32, #tpu.memory_space<vmem>>, vector<64x128xf32>,
    } else {
    }
    return
  }
  func.func @transform_0(%arg0: i32, %arg1: i32) -> (i32, i32) {
    %c0_i32 = arith.constant 0 : i32
    return %arg0, %arg1 : i32, i32
  }
  func.func @transform_1(%arg0: i32, %arg1: i32) -> (i32, i32) {
    %c0_i32 = arith.constant 0 : i32
    %c0_i32_0 = arith.constant 0 : i32
    return %c0_i32, %arg1 : i32, i32
  }
  func.func @transform_2(%arg0: i32, %arg1: i32) -> (i32, i32) {
    %c0_i32 = arith.constant 0 : i32
    %c0_i32_0 = arith.constant 0 : i32
    return %c0_i32, %arg1 : i32, i32
  }
  func.func @transform_3(%arg0: i32, %arg1: i32) -> (i32, i32) {
    %c0_i32 = arith.constant 0 : i32
    %c0_i32_0 = arith.constant 0 : i32
    return %arg1, %c0_i32 : i32, i32
  }
  func.func @transform_4(%arg0: i32, %arg1: i32) -> (i32, i32) {
    %c0_i32 = arith.constant 0 : i32
    %c0_i32_0 = arith.constant 0 : i32
    %c0_i32_1 = arith.constant 0 : i32
    return %c0_i32, %c0_i32_0 : i32, i32
  }
  func.func @transform_5(%arg0: i32, %arg1: i32) -> (i32, i32) {
    %c0_i32 = arith.constant 0 : i32
    %c0_i32_0 = arith.constant 0 : i32
    return %arg0, %c0_i32 : i32, i32
  }
}

</mosaic_0001>

<llo_original>
// kernel: mlp_forward.3
$region0: #{mlp_forward.3}
  #allocation0 [shape = 'u32[]', space=smem, size = 0x4, offset = 0x4, fixed_abs, tag = 'smem constant byte address 0x4 - core index']
  #allocation1 [shape = 'u32[144,128]{1,0:T(1,128)}', space=vmem, size = 0x12000, scoped, tag = 'internal scratch']
  #allocation2 [shape = 'f32[64,128]{1,0:T(8,128)}', space=vmem, size = 0x8000, scoped, tag = 'scratch operand']
  %s0 = inlined_call_operand.vmem [shape: bf16[64,128], index: 0, kind: input, shape index: {}]
  %s1 = inlined_call_operand.vmem [shape: f32[1,128], index: 1, kind: input, shape index: {}]
  %s2 = inlined_call_operand.vmem [shape: f32[1,128], index: 2, kind: input, shape index: {}]
  %s3 = inlined_call_operand.vmem [shape: bf16[128,128], index: 3, kind: input, shape index: {}]
  %s4 = inlined_call_operand.vmem [shape: f32[1,128], index: 4, kind: input, shape index: {}]
  %s5 = inlined_call_operand.vmem [shape: f32[64,128], index: 5, kind: output, shape index: {}]
  %s6 = sld [smem:[#allocation0]]
  $region38: #{mlp_forward.3} parent=0
    _
  %s8 = ssub.s32 1, %s6
  %s9 = scalar_select 0, %s8, %s6
  // Predicated region
  $region2: #{mlp_forward.3} parent=0 // pred_check
    _
  $region3: #{mlp_forward.3} parent=0 // pred_check_branch
    %11 = sbr.rel (0) target = $region5
  $region4: #{mlp_forward.3} parent=0 // pred_region
    _
  $region5: #{mlp_forward.3} parent=0 // pred_fallthru
    _
  // Predicated region
  $region6: #{mlp_forward.3} parent=0 // pred_check
    _
  $region7: #{mlp_forward.3} parent=0 // pred_check_branch
    %13 = sbr.rel (0) target = $region9
  $region8: #{mlp_forward.3} parent=0 // pred_region
    _
  $region9: #{mlp_forward.3} parent=0 // pred_fallthru
    _
  // Predicated region
  $region10: #{mlp_forward.3} parent=0 // pred_check
    _
  $region11: #{mlp_forward.3} parent=0 // pred_check_branch
    %15 = sbr.rel (0) target = $region13
  $region12: #{mlp_forward.3} parent=0 // pred_region
    _
  $region13: #{mlp_forward.3} parent=0 // pred_fallthru
    _
  // Predicated region
  $region14: #{mlp_forward.3} parent=0 // pred_check
    _
  $region15: #{mlp_forward.3} parent=0 // pred_check_branch
    %17 = sbr.rel (0) target = $region17
  $region16: #{mlp_forward.3} parent=0 // pred_region
    _
  $region17: #{mlp_forward.3} parent=0 // pred_fallthru
    _
  // Predicated region
  $region18: #{mlp_forward.3} parent=0 // pred_check
    _
  $region19: #{mlp_forward.3} parent=0 // pred_check_branch
    %19 = sbr.rel (0) target = $region21
  $region20: #{mlp_forward.3} parent=0 // pred_region
    _
  $region21: #{mlp_forward.3} parent=0 // pred_fallthru
    _
  %p21 = scmp.eq.s32.totalorder 0, 0
  // Predicated region
  $region22: #{mlp_forward.3} parent=0 // pred_check
    %p22 = pneg %p21
  $region23: #{mlp_forward.3} parent=0 // pred_check_branch
    %24 = sbr.rel (%p22) target = $region25
  $region24: #{mlp_forward.3} parent=0 // pred_region
    %25 = vst [vmem:[#allocation2] sm:$0xff] 0.0
    %26 = vst [vmem:[#allocation2 + $0x8] sm:$0xff] 0.0
    %27 = vst [vmem:[#allocation2 + $0x10] sm:$0xff] 0.0
    %28 = vst [vmem:[#allocation2 + $0x18] sm:$0xff] 0.0
    %29 = vst [vmem:[#allocation2 + $0x20] sm:$0xff] 0.0
    %30 = vst [vmem:[#allocation2 + $0x28] sm:$0xff] 0.0
    %31 = vst [vmem:[#allocation2 + $0x30] sm:$0xff] 0.0
    %32 = vst [vmem:[#allocation2 + $0x38] sm:$0xff] 0.0
  $region25: #{mlp_forward.3} parent=0 // pred_fallthru
    _
  %v33 = vld [vmem:[%s0] sm:$0xf]
  %v34 = vld [vmem:[%s0 + $0x4] sm:$0xf]
  %v35 = vld [vmem:[%s0 + $0x8] sm:$0xf]
  %v36 = vld [vmem:[%s0 + $0xc] sm:$0xf]
  %v37 = vld [vmem:[%s0 + $0x10] sm:$0xf]
  %v38 = vld [vmem:[%s0 + $0x14] sm:$0xf]
  %v39 = vld [vmem:[%s0 + $0x18] sm:$0xf]
  %v40 = vld [vmem:[%s0 + $0x1c] sm:$0xf]
  %v41 = vunpack.c.l.bf16 %v33
  %v42 = vunpack.c.l.bf16 %v34
  %v43 = vunpack.c.l.bf16 %v35
  %v44 = vunpack.c.l.bf16 %v36
  %v45 = vunpack.c.l.bf16 %v37
  %v46 = vunpack.c.l.bf16 %v38
  %v47 = vunpack.c.l.bf16 %v39
  %v48 = vunpack.c.l.bf16 %v40
  %v49 = vld [vmem:[%s1] sm:$0x1]
  %v51 = vlaneseq
  %v52 = vshrl.u32 %v51, 7
  %v53 = vsub.s32 0, %v52
  %v54 = vrot.slane %v49, %v53
  %v56 = vmul.f32 %v41, %v54
  %v57 = vmul.f32 %v42, %v54
  %v58 = vmul.f32 %v43, %v54
  %v59 = vmul.f32 %v44, %v54
  %v60 = vmul.f32 %v45, %v54
  %v61 = vmul.f32 %v46, %v54
  %v62 = vmul.f32 %v47, %v54
  %v63 = vmul.f32 %v48, %v54
  %v64 = vld [vmem:[%s2] sm:$0x1]
  %v66 = vlaneseq
  %v67 = vshrl.u32 %v66, 7
  %v68 = vsub.s32 0, %v67
  %v69 = vrot.slane %v64, %v68
  %v71 = vadd.f32 %v56, %v69
  %v72 = vadd.f32 %v57, %v69
  %v73 = vadd.f32 %v58, %v69
  %v74 = vadd.f32 %v59, %v69
  %v75 = vadd.f32 %v60, %v69
  %v76 = vadd.f32 %v61, %v69
  %v77 = vadd.f32 %v62, %v69
  %v78 = vadd.f32 %v63, %v69
  %v79 = vmax.f32 %v71, 0.0
  %v80 = vmax.f32 %v72, 0.0
  %v81 = vmax.f32 %v73, 0.0
  %v82 = vmax.f32 %v74, 0.0
  %v83 = vmax.f32 %v75, 0.0
  %v84 = vmax.f32 %v76, 0.0
  %v85 = vmax.f32 %v77, 0.0
  %v86 = vmax.f32 %v78, 0.0
  %v87 = vld [vmem:[#allocation2] sm:$0xff]
  %v88 = vld [vmem:[#allocation2 + $0x8] sm:$0xff]
  %v89 = vld [vmem:[#allocation2 + $0x10] sm:$0xff]
  %v90 = vld [vmem:[#allocation2 + $0x18] sm:$0xff]
  %v91 = vld [vmem:[#allocation2 + $0x20] sm:$0xff]
  %v92 = vld [vmem:[#allocation2 + $0x28] sm:$0xff]
  %v93 = vld [vmem:[#allocation2 + $0x30] sm:$0xff]
  %v94 = vld [vmem:[#allocation2 + $0x38] sm:$0xff]
  %v95 = vpack.c.bf16 %v80, %v79
  %v96 = vpack.c.bf16 %v82, %v81
  %v97 = vpack.c.bf16 %v84, %v83
  %v98 = vpack.c.bf16 %v86, %v85
  %v99 = vld [vmem:[%s3] sm:$0xf]
  %v100 = vld [vmem:[%s3 + $0x4] sm:$0xf]
  %v101 = vld [vmem:[%s3 + $0x8] sm:$0xf]
  %v102 = vld [vmem:[%s3 + $0xc] sm:$0xf]
  %v103 = vld [vmem:[%s3 + $0x10] sm:$0xf]
  %v104 = vld [vmem:[%s3 + $0x14] sm:$0xf]
  %v105 = vld [vmem:[%s3 + $0x18] sm:$0xf]
  %v106 = vld [vmem:[%s3 + $0x1c] sm:$0xf]
  %v107 = vld [vmem:[%s3 + $0x20] sm:$0xf]
  %v108 = vld [vmem:[%s3 + $0x24] sm:$0xf]
  %v109 = vld [vmem:[%s3 + $0x28] sm:$0xf]
  %v110 = vld [vmem:[%s3 + $0x2c] sm:$0xf]
  %v111 = vld [vmem:[%s3 + $0x30] sm:$0xf]
  %v112 = vld [vmem:[%s3 + $0x34] sm:$0xf]
  %v113 = vld [vmem:[%s3 + $0x38] sm:$0xf]
  %v114 = vld [vmem:[%s3 + $0x3c] sm:$0xf]
  %v131 = vunpack.c.l.b16 %v99
  %v132 = vunpack.c.l.b16 %v100
  %v133 = vunpack.c.l.b16 %v101
  %v134 = vunpack.c.l.b16 %v102
  %v135 = vunpack.c.l.b16 %v103
  %v136 = vunpack.c.l.b16 %v104
  %v137 = vunpack.c.l.b16 %v105
  %v138 = vunpack.c.l.b16 %v106
  %v139 = vunpack.c.l.b16 %v107
  %v140 = vunpack.c.l.b16 %v108
  %v141 = vunpack.c.l.b16 %v109
  %v142 = vunpack.c.l.b16 %v110
  %v143 = vunpack.c.l.b16 %v111
  %v144 = vunpack.c.l.b16 %v112
  %v145 = vunpack.c.l.b16 %v113
  %v146 = vunpack.c.l.b16 %v114
  %v147 = vpack.c.b16 %v132, %v131
  %v148 = vpack.c.b16 %v134, %v133
  %v149 = vpack.c.b16 %v136, %v135
  %v150 = vpack.c.b16 %v138, %v137
  %v151 = vpack.c.b16 %v140, %v139
  %v152 = vpack.c.b16 %v142, %v141
  %v153 = vpack.c.b16 %v144, %v143
  %v154 = vpack.c.b16 %v146, %v145
  %163 = vmatprep.subr.bf16.mxu0 0
  %164 = vmatpush1.bf16.msra.mxu0 %v154
  %165 = vmatprep.subr.bf16.mxu0 0
  %166 = vmatpush1.bf16.msra.mxu0 %v153
  %167 = vmatprep.subr.bf16.mxu0 0
  %168 = vmatpush1.bf16.msra.mxu0 %v152
  %169 = vmatprep.subr.bf16.mxu0 0
  %170 = vmatpush1.bf16.msra.mxu0 %v151
  %171 = vmatprep.subr.bf16.mxu0 0
  %172 = vmatpush1.bf16.msra.mxu0 %v150
  %173 = vmatprep.subr.bf16.mxu0 0
  %174 = vmatpush1.bf16.msra.mxu0 %v149
  %175 = vmatprep.subr.bf16.mxu0 0
  %176 = vmatpush1.bf16.msra.mxu0 %v148
  %177 = vmatprep.subr.bf16.mxu0 0
  %178 = vmatpush1.bf16.msra.mxu0 %v147
  %179 = vmatprep.subr.bf16.mxu0 0
  %180 = vmatpush2.bf16.msra.mxu0 0
  %181 = vmatprep.subr.bf16.mxu0 0
  %182 = vmatpush2.bf16.msra.mxu0 0
  %183 = vmatprep.subr.bf16.mxu0 0
  %184 = vmatpush2.bf16.msra.mxu0 0
  %185 = vmatprep.subr.bf16.mxu0 0
  %186 = vmatpush2.bf16.msra.mxu0 0
  %187 = vmatprep.subr.bf16.mxu0 0
  %188 = vmatpush2.bf16.msra.mxu0 0
  %189 = vmatprep.subr.bf16.mxu0 0
  %190 = vmatpush2.bf16.msra.mxu0 0
  %191 = vmatprep.subr.bf16.mxu0 0
  %192 = vmatpush2.bf16.msra.mxu0 0
  %193 = vmatprep.subr.bf16.mxu0 0
  %194 = vmatpush2.bf16.msra.mxu0 0
  %195 = vmatprep.mubr.bf16.mxu0 0
  %196 = vmatmul.mubr.bf16.gmra.mxu0 %v95
  %v197 = vpop.f32.mrf.mxu0
  %v198 = vadd.f32 0.0, %v197
  %v199 = vpop.f32.mrf.mxu0
  %v200 = vpop.f32.mrf.mxu0
  %v201 = vadd.f32 0.0, %v200
  %v202 = vpop.f32.mrf.mxu0
  %203 = vmatprep.mubr.bf16.mxu0 0
  %204 = vmatmul.mubr.bf16.gmra.mxu0 %v96
  %v205 = vpop.f32.mrf.mxu0
  %v206 = vadd.f32 0.0, %v205
  %v207 = vpop.f32.mrf.mxu0
  %v208 = vpop.f32.mrf.mxu0
  %v209 = vadd.f32 0.0, %v208
  %v210 = vpop.f32.mrf.mxu0
  %211 = vmatprep.mubr.bf16.mxu0 0
  %212 = vmatmul.mubr.bf16.gmra.mxu0 %v97
  %v213 = vpop.f32.mrf.mxu0
  %v214 = vadd.f32 0.0, %v213
  %v215 = vpop.f32.mrf.mxu0
  %v216 = vpop.f32.mrf.mxu0
  %v217 = vadd.f32 0.0, %v216
  %v218 = vpop.f32.mrf.mxu0
  %219 = vmatprep.mubr.bf16.mxu0 0
  %220 = vmatmul.mubr.bf16.gmra.mxu0 %v98
  %v221 = vpop.f32.mrf.mxu0
  %v222 = vadd.f32 0.0, %v221
  %v223 = vpop.f32.mrf.mxu0
  %v224 = vpop.f32.mrf.mxu0
  %v225 = vadd.f32 0.0, %v224
  %v226 = vpop.f32.mrf.mxu0
  %227 = vdwg.mxu0
  %v228 = vadd.f32 %v87, %v198
  %v229 = vadd.f32 %v88, %v201
  %v230 = vadd.f32 %v89, %v206
  %v231 = vadd.f32 %v90, %v209
  %v232 = vadd.f32 %v91, %v214
  %v233 = vadd.f32 %v92, %v217
  %v234 = vadd.f32 %v93, %v222
  %v235 = vadd.f32 %v94, %v225
  %236 = vst [vmem:[#allocation2] sm:$0xff] %v228
  %237 = vst [vmem:[#allocation2 + $0x8] sm:$0xff] %v229
  %238 = vst [vmem:[#allocation2 + $0x10] sm:$0xff] %v230
  %239 = vst [vmem:[#allocation2 + $0x18] sm:$0xff] %v231
  %240 = vst [vmem:[#allocation2 + $0x20] sm:$0xff] %v232
  %241 = vst [vmem:[#allocation2 + $0x28] sm:$0xff] %v233
  %242 = vst [vmem:[#allocation2 + $0x30] sm:$0xff] %v234
  %243 = vst [vmem:[#allocation2 + $0x38] sm:$0xff] %v235
  // Predicated region
  $region26: #{mlp_forward.3} parent=0 // pred_check
    %p244 = pneg %p21
  $region27: #{mlp_forward.3} parent=0 // pred_check_branch
    %246 = sbr.rel (%p244) target = $region29
  $region28: #{mlp_forward.3} parent=0 // pred_region
    %v247 = vld [vmem:[#allocation2] sm:$0xff]
    %v248 = vld [vmem:[#allocation2 + $0x8] sm:$0xff]
    %v249 = vld [vmem:[#allocation2 + $0x10] sm:$0xff]
    %v250 = vld [vmem:[#allocation2 + $0x18] sm:$0xff]
    %v251 = vld [vmem:[#allocation2 + $0x20] sm:$0xff]
    %v252 = vld [vmem:[#allocation2 + $0x28] sm:$0xff]
    %v253 = vld [vmem:[#allocation2 + $0x30] sm:$0xff]
    %v254 = vld [vmem:[#allocation2 + $0x38] sm:$0xff]
    %v255 = vld [vmem:[%s4] sm:$0x1]
    %v257 = vlaneseq
    %v258 = vshrl.u32 %v257, 7
    %v259 = vsub.s32 0, %v258
    %v260 = vrot.slane %v255, %v259
    %v262 = vadd.f32 %v247, %v260
    %v263 = vadd.f32 %v248, %v260
    %v264 = vadd.f32 %v249, %v260
    %v265 = vadd.f32 %v250, %v260
    %v266 = vadd.f32 %v251, %v260
    %v267 = vadd.f32 %v252, %v260
    %v268 = vadd.f32 %v253, %v260
    %v269 = vadd.f32 %v254, %v260
    %270 = vst [vmem:[%s5] sm:$0xff] %v262
    %271 = vst [vmem:[%s5 + $0x8] sm:$0xff] %v263
    %272 = vst [vmem:[%s5 + $0x10] sm:$0xff] %v264
    %273 = vst [vmem:[%s5 + $0x18] sm:$0xff] %v265
    %274 = vst [vmem:[%s5 + $0x20] sm:$0xff] %v266
    %275 = vst [vmem:[%s5 + $0x28] sm:$0xff] %v267
    %276 = vst [vmem:[%s5 + $0x30] sm:$0xff] %v268
    %277 = vst [vmem:[%s5 + $0x38] sm:$0xff] %v269
  $region29: #{mlp_forward.3} parent=0 // pred_fallthru
    _
  // Predicated region
  $region30: #{mlp_forward.3} parent=0 // pred_check
    _
  $region31: #{mlp_forward.3} parent=0 // pred_check_branch
    %279 = sbr.rel (0) target = $region33
  $region32: #{mlp_forward.3} parent=0 // pred_region
    _
  $region33: #{mlp_forward.3} parent=0 // pred_fallthru
    _
  // Predicated region
  $region34: #{mlp_forward.3} parent=0 // pred_check
    _
  $region35: #{mlp_forward.3} parent=0 // pred_check_branch
    %281 = sbr.rel (0) target = $region37
  $region36: #{mlp_forward.3} parent=0 // pred_region
    _
  $region37: #{mlp_forward.3} parent=0 // pred_fallthru
    _

// kernel: mlp_forward.2
$region0: #{mlp_forward.2}
  #allocation0 [shape = 'u32[]', space=smem, size = 0x4, offset = 0x4, fixed_abs, tag = 'smem constant byte address 0x4 - core index']
  #allocation1 [shape = 'u32[144,128]{1,0:T(1,128)}', space=vmem, size = 0x12000, scoped, tag = 'internal scratch']
  #allocation2 [shape = 'f32[64,128]{1,0:T(8,128)}', space=vmem, size = 0x8000, scoped, tag = 'scratch operand']
  %s0 = inlined_call_operand.vmem [shape: bf16[64,128], index: 0, kind: input, shape index: {}]
  %s1 = inlined_call_operand.vmem [shape: bf16[128,128], index: 1, kind: input, shape index: {}]
  %s2 = inlined_call_operand.vmem [shape: bf16[64,128], index: 2, kind: output, shape index: {0}]
  %s3 = inlined_call_operand.vmem [shape: f32[1,128], index: 3, kind: output, shape index: {1}]
  %s4 = inlined_call_operand.vmem [shape: f32[1,128], index: 4, kind: output, shape index: {2}]
  %5 = xla_tuple %s2, %s3, %s4
  %s6 = sld [smem:[#allocation0]]
  $region42: #{mlp_forward.2} parent=0
    _
  %s8 = ssub.s32 1, %s6
  %s9 = scalar_select 0, %s8, %s6
  // Predicated region
  $region2: #{mlp_forward.2} parent=0 // pred_check
    _
  $region3: #{mlp_forward.2} parent=0 // pred_check_branch
    %11 = sbr.rel (0) target = $region5
  $region4: #{mlp_forward.2} parent=0 // pred_region
    _
  $region5: #{mlp_forward.2} parent=0 // pred_fallthru
    _
  // Predicated region
  $region6: #{mlp_forward.2} parent=0 // pred_check
    _
  $region7: #{mlp_forward.2} parent=0 // pred_check_branch
    %13 = sbr.rel (0) target = $region9
  $region8: #{mlp_forward.2} parent=0 // pred_region
    _
  $region9: #{mlp_forward.2} parent=0 // pred_fallthru
    _
  %p15 = scmp.eq.s32.totalorder 0, 0
  // Predicated region
  $region10: #{mlp_forward.2} parent=0 // pred_check
    %p16 = pneg %p15
  $region11: #{mlp_forward.2} parent=0 // pred_check_branch
    %18 = sbr.rel (%p16) target = $region13
  $region12: #{mlp_forward.2} parent=0 // pred_region
    %19 = vst [vmem:[#allocation2] sm:$0xff] 0.0
    %20 = vst [vmem:[#allocation2 + $0x8] sm:$0xff] 0.0
    %21 = vst [vmem:[#allocation2 + $0x10] sm:$0xff] 0.0
    %22 = vst [vmem:[#allocation2 + $0x18] sm:$0xff] 0.0
    %23 = vst [vmem:[#allocation2 + $0x20] sm:$0xff] 0.0
    %24 = vst [vmem:[#allocation2 + $0x28] sm:$0xff] 0.0
    %25 = vst [vmem:[#allocation2 + $0x30] sm:$0xff] 0.0
    %26 = vst [vmem:[#allocation2 + $0x38] sm:$0xff] 0.0
  $region13: #{mlp_forward.2} parent=0 // pred_fallthru
    _
  %v27 = vld [vmem:[#allocation2] sm:$0xff]
  %v28 = vld [vmem:[#allocation2 + $0x8] sm:$0xff]
  %v29 = vld [vmem:[#allocation2 + $0x10] sm:$0xff]
  %v30 = vld [vmem:[#allocation2 + $0x18] sm:$0xff]
  %v31 = vld [vmem:[#allocation2 + $0x20] sm:$0xff]
  %v32 = vld [vmem:[#allocation2 + $0x28] sm:$0xff]
  %v33 = vld [vmem:[#allocation2 + $0x30] sm:$0xff]
  %v34 = vld [vmem:[#allocation2 + $0x38] sm:$0xff]
  %v35 = vld [vmem:[%s0] sm:$0xf]
  %v36 = vld [vmem:[%s0 + $0x4] sm:$0xf]
  %v37 = vld [vmem:[%s0 + $0x8] sm:$0xf]
  %v38 = vld [vmem:[%s0 + $0xc] sm:$0xf]
  %v39 = vld [vmem:[%s0 + $0x10] sm:$0xf]
  %v40 = vld [vmem:[%s0 + $0x14] sm:$0xf]
  %v41 = vld [vmem:[%s0 + $0x18] sm:$0xf]
  %v42 = vld [vmem:[%s0 + $0x1c] sm:$0xf]
  %v43 = vld [vmem:[%s1] sm:$0xf]
  %v44 = vld [vmem:[%s1 + $0x4] sm:$0xf]
  %v45 = vld [vmem:[%s1 + $0x8] sm:$0xf]
  %v46 = vld [vmem:[%s1 + $0xc] sm:$0xf]
  %v47 = vld [vmem:[%s1 + $0x10] sm:$0xf]
  %v48 = vld [vmem:[%s1 + $0x14] sm:$0xf]
  %v49 = vld [vmem:[%s1 + $0x18] sm:$0xf]
  %v50 = vld [vmem:[%s1 + $0x1c] sm:$0xf]
  %v51 = vld [vmem:[%s1 + $0x20] sm:$0xf]
  %v52 = vld [vmem:[%s1 + $0x24] sm:$0xf]
  %v53 = vld [vmem:[%s1 + $0x28] sm:$0xf]
  %v54 = vld [vmem:[%s1 + $0x2c] sm:$0xf]
  %v55 = vld [vmem:[%s1 + $0x30] sm:$0xf]
  %v56 = vld [vmem:[%s1 + $0x34] sm:$0xf]
  %v57 = vld [vmem:[%s1 + $0x38] sm:$0xf]
  %v58 = vld [vmem:[%s1 + $0x3c] sm:$0xf]
  %v67 = vunpack.c.l.b16 %v35
  %v68 = vunpack.c.l.b16 %v36
  %v69 = vunpack.c.l.b16 %v37
  %v70 = vunpack.c.l.b16 %v38
  %v71 = vunpack.c.l.b16 %v39
  %v72 = vunpack.c.l.b16 %v40
  %v73 = vunpack.c.l.b16 %v41
  %v74 = vunpack.c.l.b16 %v42
  %v75 = vpack.c.b16 %v68, %v67
  %v76 = vpack.c.b16 %v70, %v69
  %v77 = vpack.c.b16 %v72, %v71
  %v78 = vpack.c.b16 %v74, %v73
  %v99 = vunpack.c.l.b16 %v43
  %v100 = vunpack.c.l.b16 %v44
  %v101 = vunpack.c.l.b16 %v45
  %v102 = vunpack.c.l.b16 %v46
  %v103 = vunpack.c.l.b16 %v47
  %v104 = vunpack.c.l.b16 %v48
  %v105 = vunpack.c.l.b16 %v49
  %v106 = vunpack.c.l.b16 %v50
  %v107 = vunpack.c.l.b16 %v51
  %v108 = vunpack.c.l.b16 %v52
  %v109 = vunpack.c.l.b16 %v53
  %v110 = vunpack.c.l.b16 %v54
  %v111 = vunpack.c.l.b16 %v55
  %v112 = vunpack.c.l.b16 %v56
  %v113 = vunpack.c.l.b16 %v57
  %v114 = vunpack.c.l.b16 %v58
  %v115 = vpack.c.b16 %v100, %v99
  %v116 = vpack.c.b16 %v102, %v101
  %v117 = vpack.c.b16 %v104, %v103
  %v118 = vpack.c.b16 %v106, %v105
  %v119 = vpack.c.b16 %v108, %v107
  %v120 = vpack.c.b16 %v110, %v109
  %v121 = vpack.c.b16 %v112, %v111
  %v122 = vpack.c.b16 %v114, %v113
  %131 = vmatprep.subr.bf16.mxu0 0
  %132 = vmatpush1.bf16.msra.mxu0 %v122
  %133 = vmatprep.subr.bf16.mxu0 0
  %134 = vmatpush1.bf16.msra.mxu0 %v121
  %135 = vmatprep.subr.bf16.mxu0 0
  %136 = vmatpush1.bf16.msra.mxu0 %v120
  %137 = vmatprep.subr.bf16.mxu0 0
  %138 = vmatpush1.bf16.msra.mxu0 %v119
  %139 = vmatprep.subr.bf16.mxu0 0
  %140 = vmatpush1.bf16.msra.mxu0 %v118
  %141 = vmatprep.subr.bf16.mxu0 0
  %142 = vmatpush1.bf16.msra.mxu0 %v117
  %143 = vmatprep.subr.bf16.mxu0 0
  %144 = vmatpush1.bf16.msra.mxu0 %v116
  %145 = vmatprep.subr.bf16.mxu0 0
  %146 = vmatpush1.bf16.msra.mxu0 %v115
  %147 = vmatprep.subr.bf16.mxu0 0
  %148 = vmatpush2.bf16.msra.mxu0 0
  %149 = vmatprep.subr.bf16.mxu0 0
  %150 = vmatpush2.bf16.msra.mxu0 0
  %151 = vmatprep.subr.bf16.mxu0 0
  %152 = vmatpush2.bf16.msra.mxu0 0
  %153 = vmatprep.subr.bf16.mxu0 0
  %154 = vmatpush2.bf16.msra.mxu0 0
  %155 = vmatprep.subr.bf16.mxu0 0
  %156 = vmatpush2.bf16.msra.mxu0 0
  %157 = vmatprep.subr.bf16.mxu0 0
  %158 = vmatpush2.bf16.msra.mxu0 0
  %159 = vmatprep.subr.bf16.mxu0 0
  %160 = vmatpush2.bf16.msra.mxu0 0
  %161 = vmatprep.subr.bf16.mxu0 0
  %162 = vmatpush2.bf16.msra.mxu0 0
  %163 = vmatprep.mubr.bf16.mxu0 0
  %164 = vmatmul.mubr.bf16.gmra.mxu0 %v75
  %v165 = vpop.f32.mrf.mxu0
  %v166 = vadd.f32 0.0, %v165
  %v167 = vpop.f32.mrf.mxu0
  %v168 = vpop.f32.mrf.mxu0
  %v169 = vadd.f32 0.0, %v168
  %v170 = vpop.f32.mrf.mxu0
  %171 = vmatprep.mubr.bf16.mxu0 0
  %172 = vmatmul.mubr.bf16.gmra.mxu0 %v76
  %v173 = vpop.f32.mrf.mxu0
  %v174 = vadd.f32 0.0, %v173
  %v175 = vpop.f32.mrf.mxu0
  %v176 = vpop.f32.mrf.mxu0
  %v177 = vadd.f32 0.0, %v176
  %v178 = vpop.f32.mrf.mxu0
  %179 = vmatprep.mubr.bf16.mxu0 0
  %180 = vmatmul.mubr.bf16.gmra.mxu0 %v77
  %v181 = vpop.f32.mrf.mxu0
  %v182 = vadd.f32 0.0, %v181
  %v183 = vpop.f32.mrf.mxu0
  %v184 = vpop.f32.mrf.mxu0
  %v185 = vadd.f32 0.0, %v184
  %v186 = vpop.f32.mrf.mxu0
  %187 = vmatprep.mubr.bf16.mxu0 0
  %188 = vmatmul.mubr.bf16.gmra.mxu0 %v78
  %v189 = vpop.f32.mrf.mxu0
  %v190 = vadd.f32 0.0, %v189
  %v191 = vpop.f32.mrf.mxu0
  %v192 = vpop.f32.mrf.mxu0
  %v193 = vadd.f32 0.0, %v192
  %v194 = vpop.f32.mrf.mxu0
  %195 = vdwg.mxu0
  %v196 = vadd.f32 %v27, %v166
  %v197 = vadd.f32 %v28, %v169
  %v198 = vadd.f32 %v29, %v174
  %v199 = vadd.f32 %v30, %v177
  %v200 = vadd.f32 %v31, %v182
  %v201 = vadd.f32 %v32, %v185
  %v202 = vadd.f32 %v33, %v190
  %v203 = vadd.f32 %v34, %v193
  %204 = vst [vmem:[#allocation2] sm:$0xff] %v196
  %205 = vst [vmem:[#allocation2 + $0x8] sm:$0xff] %v197
  %206 = vst [vmem:[#allocation2 + $0x10] sm:$0xff] %v198
  %207 = vst [vmem:[#allocation2 + $0x18] sm:$0xff] %v199
  %208 = vst [vmem:[#allocation2 + $0x20] sm:$0xff] %v200
  %209 = vst [vmem:[#allocation2 + $0x28] sm:$0xff] %v201
  %210 = vst [vmem:[#allocation2 + $0x30] sm:$0xff] %v202
  %211 = vst [vmem:[#allocation2 + $0x38] sm:$0xff] %v203
  // Predicated region
  $region14: #{mlp_forward.2} parent=0 // pred_check
    %p212 = pneg %p15
  $region15: #{mlp_forward.2} parent=0 // pred_check_branch
    %214 = sbr.rel (%p212) target = $region17
  $region16: #{mlp_forward.2} parent=0 // pred_region
    %v215 = vld [vmem:[#allocation2] sm:$0xff]
    %v216 = vld [vmem:[#allocation2 + $0x8] sm:$0xff]
    %v217 = vld [vmem:[#allocation2 + $0x10] sm:$0xff]
    %v218 = vld [vmem:[#allocation2 + $0x18] sm:$0xff]
    %v219 = vld [vmem:[#allocation2 + $0x20] sm:$0xff]
    %v220 = vld [vmem:[#allocation2 + $0x28] sm:$0xff]
    %v221 = vld [vmem:[#allocation2 + $0x30] sm:$0xff]
    %v222 = vld [vmem:[#allocation2 + $0x38] sm:$0xff]
    %v223 = vpack.c.bf16 %v216, %v215
    %v224 = vpack.c.bf16 %v218, %v217
    %v225 = vpack.c.bf16 %v220, %v219
    %v226 = vpack.c.bf16 %v222, %v221
    %v231 = vunpack.c.l.b16 %v223
    %v232 = vunpack.c.h.b16 %v223
    %v233 = vunpack.c.l.b16 %v224
    %v234 = vunpack.c.h.b16 %v224
    %v235 = vunpack.c.l.b16 %v225
    %v236 = vunpack.c.h.b16 %v225
    %v237 = vunpack.c.l.b16 %v226
    %v238 = vunpack.c.h.b16 %v226
    %v239 = vpack.c.b16 %v231, %v231
    %v240 = vpack.c.b16 %v232, %v232
    %v241 = vpack.c.b16 %v233, %v233
    %v242 = vpack.c.b16 %v234, %v234
    %v243 = vpack.c.b16 %v235, %v235
    %v244 = vpack.c.b16 %v236, %v236
    %v245 = vpack.c.b16 %v237, %v237
    %v246 = vpack.c.b16 %v238, %v238
    %255 = vst [vmem:[%s2] sm:$0xf] %v239
    %256 = vst [vmem:[%s2 + $0x4] sm:$0xf] %v240
    %257 = vst [vmem:[%s2 + $0x8] sm:$0xf] %v241
    %258 = vst [vmem:[%s2 + $0xc] sm:$0xf] %v242
    %259 = vst [vmem:[%s2 + $0x10] sm:$0xf] %v243
    %260 = vst [vmem:[%s2 + $0x14] sm:$0xf] %v244
    %261 = vst [vmem:[%s2 + $0x18] sm:$0xf] %v245
    %262 = vst [vmem:[%s2 + $0x1c] sm:$0xf] %v246
    %v263 = vadd.f32 %v215, %v216
    %v264 = vadd.f32 %v263, %v217
    %v265 = vadd.f32 %v264, %v218
    %v266 = vadd.f32 %v265, %v219
    %v267 = vadd.f32 %v266, %v220
    %v268 = vadd.f32 %v267, %v221
    %v269 = vadd.f32 %v268, %v222
    %v270 = vrot.slane %v269, 4
    %v271 = vadd.f32 %v269, %v270
    %v272 = vrot.slane %v271, 2
    %v273 = vadd.f32 %v271, %v272
    %v274 = vrot.slane %v273, 1
    %v275 = vadd.f32 %v273, %v274
    %276 = vst [vmem:[%s3] sm:$0x1] %v275
    %v277 = vmul.f32 %v215, %v215
    %v278 = vmul.f32 %v216, %v216
    %v279 = vmul.f32 %v217, %v217
    %v280 = vmul.f32 %v218, %v218
    %v281 = vmul.f32 %v219, %v219
    %v282 = vmul.f32 %v220, %v220
    %v283 = vmul.f32 %v221, %v221
    %v284 = vmul.f32 %v222, %v222
    %v285 = vadd.f32 %v277, %v278
    %v286 = vadd.f32 %v285, %v279
    %v287 = vadd.f32 %v286, %v280
    %v288 = vadd.f32 %v287, %v281
    %v289 = vadd.f32 %v288, %v282
    %v290 = vadd.f32 %v289, %v283
    %v291 = vadd.f32 %v290, %v284
    %v292 = vrot.slane %v291, 4
    %v293 = vadd.f32 %v291, %v292
    %v294 = vrot.slane %v293, 2
    %v295 = vadd.f32 %v293, %v294
    %v296 = vrot.slane %v295, 1
    %v297 = vadd.f32 %v295, %v296
    %298 = vst [vmem:[%s4] sm:$0x1] %v297
  $region17: #{mlp_forward.2} parent=0 // pred_fallthru
    _
  // Predicated region
  $region18: #{mlp_forward.2} parent=0 // pred_check
    _
  $region19: #{mlp_forward.2} parent=0 // pred_check_branch
    %300 = sbr.rel (0) target = $region21
  $region20: #{mlp_forward.2} parent=0 // pred_region
    _
  $region21: #{mlp_forward.2} parent=0 // pred_fallthru
    _
  // Predicated region
  $region22: #{mlp_forward.2} parent=0 // pred_check
    _
  $region23: #{mlp_forward.2} parent=0 // pred_check_branch
    %302 = sbr.rel (0) target = $region25
  $region24: #{mlp_forward.2} parent=0 // pred_region
    _
  $region25: #{mlp_forward.2} parent=0 // pred_fallthru
    _
  // Predicated region
  $region26: #{mlp_forward.2} parent=0 // pred_check
    _
  $region27: #{mlp_forward.2} parent=0 // pred_check_branch
    %304 = sbr.rel (0) target = $region29
  $region28: #{mlp_forward.2} parent=0 // pred_region
    _
  $region29: #{mlp_forward.2} parent=0 // pred_fallthru
    _
  // Predicated region
  $region30: #{mlp_forward.2} parent=0 // pred_check
    _
  $region31: #{mlp_forward.2} parent=0 // pred_check_branch
    %306 = sbr.rel (0) target = $region33
  $region32: #{mlp_forward.2} parent=0 // pred_region
    _
  $region33: #{mlp_forward.2} parent=0 // pred_fallthru
    _
  // Predicated region
  $region34: #{mlp_forward.2} parent=0 // pred_check
    _
  $region35: #{mlp_forward.2} parent=0 // pred_check_branch
    %308 = sbr.rel (0) target = $region37
  $region36: #{mlp_forward.2} parent=0 // pred_region
    _
  $region37: #{mlp_forward.2} parent=0 // pred_fallthru
    _
  // Predicated region
  $region38: #{mlp_forward.2} parent=0 // pred_check
    _
  $region39: #{mlp_forward.2} parent=0 // pred_check_branch
    %310 = sbr.rel (0) target = $region41
  $region40: #{mlp_forward.2} parent=0 // pred_region
    _
  $region41: #{mlp_forward.2} parent=0 // pred_fallthru
    _

</llo_original>
